<compile_context>
chip_gen: v7x
topology: tpu7x:2x2x1
jax: 0.10.0
libtpu: 0.0.40
codegen_flags: <defaults>
</compile_context>

<pallas_src>
import functools
import math

import jax
import jax.numpy as jnp
from jax.experimental import pallas as pl
from jax.experimental.pallas import tpu as pltpu

_LANE = 128
_TILE_ROWS = 4096        # 4096 x 128 f32 = 2 MiB / block (safe on v5e/v6e/v7x defaults)
_FUSED_MAX_ROWS = 4096   # single-pass fast path when the whole slab <= 2 MiB


def _cauchy_noise(shape, row_offset, seed, scale):
    """scale * tan(theta), theta ~ U(-pi/2, pi/2), from a hashed element counter.

    Distribution-equivalent to normalizer * n / h of the reference (ratio of
    independent zero-mean normals is Cauchy).  tan is computed as
    sin * rsqrt(1 - sin^2) (cos >= 0 on this range): one trig polynomial + one
    EUP rsqrt per element.  The tiny clamp keeps outputs finite on the
    probability-2^-23 endpoint draw (reference divides by a tiny h there and
    also produces a huge value).
    """
    row = jax.lax.broadcasted_iota(jnp.int32, shape, 0)
    lane = jax.lax.broadcasted_iota(jnp.int32, shape, 1)
    counter = (row_offset + row) * jnp.int32(_LANE) + lane + seed * jnp.int32(747796405)
    u = jax.lax.bitcast_convert_type(counter, jnp.uint32)
    # lowbias32 integer hash -> well-mixed 32 random bits per element.
    u = (u ^ (u >> 16)) * jnp.uint32(0x7FEB352D)
    u = (u ^ (u >> 15)) * jnp.uint32(0x846CA68B)
    u = u ^ (u >> 16)
    # Mantissa trick: f in [1, 2); theta = pi * (f - 1.5) in [-pi/2, pi/2).
    f = jax.lax.bitcast_convert_type((u >> 9) | jnp.uint32(0x3F800000), jnp.float32)
    theta = jnp.float32(math.pi) * (f - jnp.float32(1.5))
    s = jnp.sin(theta)
    c2 = jnp.maximum(jnp.float32(1.0) - s * s, jnp.float32(1e-12))
    return (scale * s) * jax.lax.rsqrt(c2)


# ---------------------------------------------------------------------------
# Single-pass fused kernel (whole slab resident in VMEM): sumsq + channel.
# Reads x from HBM once and uses a single launch (best for small/medium x).
# ---------------------------------------------------------------------------
def _fused_kernel(seed_ref, x_ref, o_ref, *, total, noise_std):
    x = x_ref[...].astype(jnp.float32)
    xx = x * x
    # Keep the scalar math as (1,1) vector ops (no scalar-core transcendentals).
    ss = jnp.sum(jnp.sum(xx, axis=0, keepdims=True), axis=1, keepdims=True)
    scale = jnp.sqrt(ss * jnp.float32(1.0 / total)) * jnp.float32(noise_std)
    noise = _cauchy_noise(x.shape, 0, seed_ref[0], scale)
    o_ref[...] = (x + noise).astype(o_ref.dtype)


# ---------------------------------------------------------------------------
# Pass 1 (large tensors): independent per-tile (8,128) partial sums of squares.
# "parallel" grid axis -> megacore-shardable on v7x; reduced in the wrapper.
# ---------------------------------------------------------------------------
def _sumsq_kernel(x_ref, part_ref, *, rows, tile_r, needs_mask):
    x = x_ref[...].astype(jnp.float32)
    xx = x * x
    if needs_mask:  # ragged last block: zero out rows past the real array end
        row0 = pl.program_id(0) * tile_r
        row = jax.lax.broadcasted_iota(jnp.int32, x.shape, 0)
        xx = jnp.where((row0 + row) < rows, xx, jnp.float32(0.0))
    part_ref[0] = jnp.sum(xx.reshape(-1, 8, _LANE), axis=0)


# ---------------------------------------------------------------------------
# Pass 2 (large tensors): elementwise Rayleigh channel.
# ---------------------------------------------------------------------------
def _channel_kernel(seed_ref, scale_ref, x_ref, o_ref, *, tile_r):
    row_offset = pl.program_id(0) * tile_r
    x = x_ref[...].astype(jnp.float32)
    noise = _cauchy_noise(x.shape, row_offset, seed_ref[0], scale_ref[0])
    o_ref[...] = (x + noise).astype(o_ref.dtype)


# ---------------------------------------------------------------------------
# Wrapper
# ---------------------------------------------------------------------------
def rayleigh_channel(x, *, snrdB=10.0, seed=0):
    snr = 10.0 ** (snrdB / 10.0)
    noise_std = math.sqrt(1.0 / snr)

    orig_shape = x.shape
    orig_dtype = x.dtype
    total = x.size

    # Lane-dense (rows, 128) slab. Pad only to lane granularity; typical
    # activation shapes (e.g. NCHW with 16x16 spatial) need no pad at all.
    rows = -(-total // _LANE)
    padded_total = rows * _LANE
    x_flat = x.reshape(-1)
    if padded_total != total:
        # TODO(synk): a masked ragged-tail block would avoid this HBM pad copy.
        x_flat = jnp.pad(x_flat, (0, padded_total - total))
    x2d = x_flat.reshape(rows, _LANE)

    seed_arr = jnp.asarray([seed], dtype=jnp.int32)

    if rows <= _FUSED_MAX_ROWS:
        # ---- Single-pass fast path: 2N HBM traffic, one launch. ------------
        y2d = pl.pallas_call(
            functools.partial(_fused_kernel, total=total, noise_std=noise_std),
            out_shape=jax.ShapeDtypeStruct((rows, _LANE), orig_dtype),
            grid=(1,),
            in_specs=[
                pl.BlockSpec(memory_space=pltpu.SMEM),           # seed (1,) i32
                pl.BlockSpec((rows, _LANE), lambda i: (0, 0)),   # whole slab
            ],
            out_specs=pl.BlockSpec((rows, _LANE), lambda i: (0, 0)),
        )(seed_arr, x2d)
    else:
        # ---- Two-pass path for large tensors. ------------------------------
        tile_r = _TILE_ROWS
        nblocks = -(-rows // tile_r)
        needs_mask = (rows % tile_r) != 0

        partials = pl.pallas_call(
            functools.partial(_sumsq_kernel, rows=rows, tile_r=tile_r,
                              needs_mask=needs_mask),
            out_shape=jax.ShapeDtypeStruct((nblocks, 8, _LANE), jnp.float32),
            grid=(nblocks,),
            in_specs=[pl.BlockSpec((tile_r, _LANE), lambda i: (i, 0))],
            out_specs=pl.BlockSpec((1, 8, _LANE), lambda i: (i, 0, 0)),
            compiler_params=pltpu.CompilerParams(dimension_semantics=("parallel",)),
        )(x2d)

        sumsq = jnp.sum(partials)
        scale = (jnp.sqrt(sumsq / jnp.float32(total))
                 * jnp.float32(noise_std)).reshape(1).astype(jnp.float32)

        y2d = pl.pallas_call(
            functools.partial(_channel_kernel, tile_r=tile_r),
            out_shape=jax.ShapeDtypeStruct((rows, _LANE), orig_dtype),
            grid=(nblocks,),
            in_specs=[
                pl.BlockSpec(memory_space=pltpu.SMEM),            # seed (1,) i32
                pl.BlockSpec(memory_space=pltpu.SMEM),            # scale (1,) f32
                pl.BlockSpec((tile_r, _LANE), lambda i: (i, 0)),  # x tile
            ],
            out_specs=pl.BlockSpec((tile_r, _LANE), lambda i: (i, 0)),
            compiler_params=pltpu.CompilerParams(dimension_semantics=("parallel",)),
        )(seed_arr, scale, x2d)

    y = y2d.reshape(-1)
    if padded_total != total:
        y = y[:total]
    return y.reshape(orig_shape)


if __name__ == "__main__":
    key = jax.random.PRNGKey(0)
    x = jax.random.normal(key, (2, 4, 16, 16), dtype=jnp.float32)  # NCHW activations

    out = rayleigh_channel(x, snrdB=10.0, seed=0)
    jax.block_until_ready(out)

    assert out.shape == x.shape and out.dtype == x.dtype
    assert bool(jnp.all(jnp.isfinite(out)))
    print("KERNEL_OK")
</pallas_src>

<mosaic_0001>
module attributes {stable_mosaic.version = 11 : i64} {
  func.func @_fused_kernel(%arg0: i32, %arg1: memref<1xi32, #tpu.memory_space<smem>>, %arg2: memref<16x128xf32, #tpu.memory_space<vmem>>, %arg3: memref<16x128xf32, #tpu.memory_space<vmem>>) attributes {dimension_semantics = [#tpu.dimension_semantics<arbitrary>], iteration_bounds = array<i64: 1>, scalar_prefetch = 0 : i64, scratch_operands = 0 : i64, tpu.core_type = #tpu.core_type<tc>, window_params = [{transform_indices = @transform_0, window_bounds = array<i64: 1>}, {pipeline_mode = #tpu.pipeline_mode<synchronous>, transform_indices = @transform_1, window_bounds = array<i64: 16, 128>}, {pipeline_mode = #tpu.pipeline_mode<synchronous>, transform_indices = @transform_2, window_bounds = array<i64: 16, 128>}]} {
    %c0 = arith.constant 0 : index
    %c0_0 = arith.constant 0 : index
    %0 = vector.load %arg2[%c0, %c0_0] : memref<16x128xf32, #tpu.memory_space<vmem>>, vector<16x128xf32>
    %1 = arith.mulf %0, %0 : vector<16x128xf32>
    %cst = arith.constant dense<0.000000e+00> : vector<128xf32>
    %2 = vector.multi_reduction <add>, %1, %cst [0] : vector<16x128xf32> to vector<128xf32>
    %3 = vector.shape_cast %2 : vector<128xf32> to vector<1x128xf32>
    %cst_1 = arith.constant dense<0.000000e+00> : vector<1xf32>
    %4 = vector.multi_reduction <add>, %3, %cst_1 [1] : vector<1x128xf32> to vector<1xf32>
    %5 = vector.shape_cast %4 : vector<1xf32> to vector<1x1xf32>
    %cst_2 = arith.constant 4.8828125E-4 : f32
    %6 = vector.broadcast %cst_2 : f32 to vector<1x1xf32>
    %7 = arith.mulf %5, %6 : vector<1x1xf32>
    %8 = math.sqrt %7 : vector<1x1xf32>
    %cst_3 = arith.constant 0.316227764 : f32
    %9 = vector.broadcast %cst_3 : f32 to vector<1x1xf32>
    %10 = arith.mulf %8, %9 : vector<1x1xf32>
    %c0_4 = arith.constant 0 : index
    %11 = memref.load %arg1[%c0_4] : memref<1xi32, #tpu.memory_space<smem>>
    %12 = tpu.iota {dimensions = array<i32: 0>} : vector<16x128xi32>
    %13 = tpu.iota {dimensions = array<i32: 1>} : vector<16x128xi32>
    %c0_i32 = arith.constant 0 : i32
    %14 = vector.broadcast %c0_i32 : i32 to vector<16x128xi32>
    %15 = arith.addi %14, %12 : vector<16x128xi32>
    %c128_i32 = arith.constant 128 : i32
    %16 = vector.broadcast %c128_i32 : i32 to vector<16x128xi32>
    %17 = arith.muli %15, %16 : vector<16x128xi32>
    %18 = arith.addi %17, %13 : vector<16x128xi32>
    %c747796405_i32 = arith.constant 747796405 : i32
    %19 = arith.muli %11, %c747796405_i32 : i32
    %20 = vector.broadcast %19 : i32 to vector<16x128xi32>
    %21 = arith.addi %18, %20 : vector<16x128xi32>
    %22 = tpu.bitcast %21 : vector<16x128xi32> -> vector<16x128xi32>
    %c16_i32 = arith.constant 16 : i32
    %23 = vector.broadcast %c16_i32 : i32 to vector<16x128xi32>
    %24 = arith.shrui %22, %23 : vector<16x128xi32>
    %25 = arith.xori %22, %24 : vector<16x128xi32>
    %c2146121005_i32 = arith.constant 2146121005 : i32
    %26 = vector.broadcast %c2146121005_i32 : i32 to vector<16x128xi32>
    %27 = arith.muli %25, %26 : vector<16x128xi32>
    %c15_i32 = arith.constant 15 : i32
    %28 = vector.broadcast %c15_i32 : i32 to vector<16x128xi32>
    %29 = arith.shrui %27, %28 : vector<16x128xi32>
    %30 = arith.xori %27, %29 : vector<16x128xi32>
    %c-2073254261_i32 = arith.constant -2073254261 : i32
    %31 = vector.broadcast %c-2073254261_i32 : i32 to vector<16x128xi32>
    %32 = arith.muli %30, %31 : vector<16x128xi32>
    %c16_i32_5 = arith.constant 16 : i32
    %33 = vector.broadcast %c16_i32_5 : i32 to vector<16x128xi32>
    %34 = arith.shrui %32, %33 : vector<16x128xi32>
    %35 = arith.xori %32, %34 : vector<16x128xi32>
    %c9_i32 = arith.constant 9 : i32
    %36 = vector.broadcast %c9_i32 : i32 to vector<16x128xi32>
    %37 = arith.shrui %35, %36 : vector<16x128xi32>
    %c1065353216_i32 = arith.constant 1065353216 : i32
    %38 = vector.broadcast %c1065353216_i32 : i32 to vector<16x128xi32>
    %39 = arith.ori %37, %38 : vector<16x128xi32>
    %40 = tpu.bitcast %39 : vector<16x128xi32> -> vector<16x128xf32>
    %cst_6 = arith.constant 1.500000e+00 : f32
    %41 = vector.broadcast %cst_6 : f32 to vector<16x128xf32>
    %42 = arith.subf %40, %41 : vector<16x128xf32>
    %cst_7 = arith.constant 3.14159274 : f32
    %43 = vector.broadcast %cst_7 : f32 to vector<16x128xf32>
    %44 = arith.mulf %43, %42 : vector<16x128xf32>
    %45 = math.sin %44 : vector<16x128xf32>
    %46 = arith.mulf %45, %45 : vector<16x128xf32>
    %cst_8 = arith.constant 1.000000e+00 : f32
    %47 = vector.broadcast %cst_8 : f32 to vector<16x128xf32>
    %48 = arith.subf %47, %46 : vector<16x128xf32>
    %cst_9 = arith.constant 9.99999996E-13 : f32
    %49 = vector.broadcast %cst_9 : f32 to vector<16x128xf32>
    %50 = arith.maximumf %48, %49 : vector<16x128xf32>
    %51 = vector.broadcast %10 : vector<1x1xf32> to vector<16x128xf32>
    %52 = arith.mulf %51, %45 : vector<16x128xf32>
    %53 = math.rsqrt %50 : vector<16x128xf32>
    %54 = arith.mulf %52, %53 : vector<16x128xf32>
    %55 = arith.addf %0, %54 : vector<16x128xf32>
    %c0_10 = arith.constant 0 : index
    %c0_11 = arith.constant 0 : index
    %56 = vector.load %arg3[%c0_10, %c0_11] : memref<16x128xf32, #tpu.memory_space<vmem>>, vector<16x128xf32>
    tpu.vector_store %arg3[%c0_10, %c0_11], %55 {strides = array<i32>} : memref<16x128xf32, #tpu.memory_space<vmem>>, vector<16x128xf32>,
    return
  }
  func.func @transform_0(%arg0: i32) -> i32 {
    %c0_i32 = arith.constant 0 : i32
    %c0_i32_0 = arith.constant 0 : i32
    return %c0_i32 : i32
  }
  func.func @transform_1(%arg0: i32) -> (i32, i32) {
    %c0_i32 = arith.constant 0 : i32
    %c0_i32_0 = arith.constant 0 : i32
    %c0_i32_1 = arith.constant 0 : i32
    return %c0_i32, %c0_i32_0 : i32, i32
  }
  func.func @transform_2(%arg0: i32) -> (i32, i32) {
    %c0_i32 = arith.constant 0 : i32
    %c0_i32_0 = arith.constant 0 : i32
    %c0_i32_1 = arith.constant 0 : i32
    return %c0_i32, %c0_i32_0 : i32, i32
  }
}

</mosaic_0001>

<llo_original>
// kernel: tpu_custom_call.1
$region0: #{tpu_custom_call.1}
  #allocation0 [shape = 'u32[]', space=smem, size = 0x4, offset = 0x4, fixed_abs, tag = 'smem constant byte address 0x4 - core index']
  #allocation1 [shape = 'u32[144,128]{1,0:T(1,128)}', space=vmem, size = 0x12000, scoped, tag = 'internal scratch']
  #allocation2 [shape = 's32[1]{0:T(128)S(6)}', space=smem, size = 0x200, scoped, tag = 'scoped memory for tpu_custom_call.1']
  %s0 = inlined_call_operand.<no memory space> [shape: s32[1], index: 0, kind: input, shape index: {}]
  %s1 = inlined_call_operand.hbm [shape: f32[16,128], index: 1, kind: input, shape index: {}]
  %s2 = inlined_call_operand.hbm [shape: f32[16,128], index: 2, kind: output, shape index: {}]
  %s3 = sld [smem:[#allocation0]]
  $region22: #{tpu_custom_call.1} parent=0
    _
  %s5 = ssub.s32 1, %s3
  %s6 = scalar_select 0, %s5, %s3
  %7 = sst [smem:[#allocation2]] %s0
  $region1: #{tpu_custom_call.1} parent=0
    #allocation3 [shape = 'u8[8192]{0}', space=vmem, size = 0x2000, scoped, tag = 'input window, operand 1, single buffered']
    #allocation4 [shape = 's32[1]{0}', space=sflag, size = 0x4, scoped, tag = 'scoped memory for tpu_custom_call.1']
    #allocation5 [shape = 's32[1]{0}', space=sflag, size = 0x4, scoped, tag = 'scoped memory for tpu_custom_call.1']
    #allocation6 [shape = 'u8[8192]{0}', space=vmem, size = 0x2000, scoped, tag = 'output window, operand 0, single buffered']
    %8 = vsyncpa [#allocation4], 0
    %9 = vsyncpa [#allocation5], 0
    // Predicated region
    $region2: #{tpu_custom_call.1} parent=1 // pred_check
      _
    $region3: #{tpu_custom_call.1} parent=1 // pred_check_branch
      %11 = sbr.rel (0) target = $region5
    $region4: #{tpu_custom_call.1} parent=1 // pred_region
      _
    $region5: #{tpu_custom_call.1} parent=1 // pred_fallthru
      _
    // Predicated region
    $region6: #{tpu_custom_call.1} parent=1 // pred_check
      _
    $region7: #{tpu_custom_call.1} parent=1 // pred_check_branch
      %13 = sbr.rel (0) target = $region9
    $region8: #{tpu_custom_call.1} parent=1 // pred_region
      %s15 = ssub.s32 256, 256
      %16 = vsyncadd [#allocation4], %s15
      %s17 = sshll.u32 [#allocation3], 4
      %s18 = int_to_ptr.vmem [resolvable:$true] %s17
      %23 = dma.hbm_to_vmem [thread:$0]  %s1, 256, %s18, [#allocation4], 128, 128, 8
    $region9: #{tpu_custom_call.1} parent=1 // pred_fallthru
      _
    // Predicated region
    $region10: #{tpu_custom_call.1} parent=1 // pred_check
      _
    $region11: #{tpu_custom_call.1} parent=1 // pred_check_branch
      %25 = sbr.rel (0) target = $region13
    $region12: #{tpu_custom_call.1} parent=1 // pred_region
      %26 = dma.done [#allocation4], 256
    $region13: #{tpu_custom_call.1} parent=1 // pred_fallthru
      _
    %v27 = vld [vmem:[#allocation3] sm:$0xff]
    %v28 = vld [vmem:[#allocation3 + $0x8] sm:$0xff]
    %v29 = vmul.f32 %v27, %v27
    %v30 = vmul.f32 %v28, %v28
    %v31 = vadd.f32 %v29, %v30
    %v32 = vrot.slane %v31, 4
    %v33 = vadd.f32 %v31, %v32
    %v34 = vrot.slane %v33, 2
    %v35 = vadd.f32 %v33, %v34
    %v36 = vrot.slane %v35, 1
    %v37 = vadd.f32 %v35, %v36
    %38 = vadd.xlane.f32.xlu0 %v37
    %v39 = vpop.xlane.xlu0 %38
    %v40 = vmul.f32 %v39, 0.00048828125
    %v41 = vrsqrt.pop %v40
    %v42 = vmul.f32 %v40, %v41
    %vm43 = vcmp.eq.f32.partialorder %v40, inf
    %v44 = vsel %vm43, %v40, %v42
    %vm45 = vcmp.eq.f32.partialorder %v40, 0.0
    %v46 = vand.u32 %v40, 2147483648
    %v47 = vsel %vm45, %v46, %v44
    %v48 = vmul.f32 %v47, 0.31622776
    %s49 = sld [smem:[#allocation2]]
    %v50 = vlaneseq
    %v51 = vshrl.u32 %v50, 7
    %v52 = vadd.s32 %v51, 8
    %v53 = vlaneseq
    %v54 = vand.u32 %v53, 127
    %v55 = vmul.u32 %v51, 128
    %v56 = vmul.u32 %v52, 128
    %v57 = vadd.s32 %v55, %v54
    %v58 = vadd.s32 %v56, %v54
    %s59 = smul.u32 %s49, 747796405
    %v60 = vstv %s59
    %v61 = vadd.s32 %v57, %v60
    %v62 = vadd.s32 %v58, %v60
    %v63 = vshrl.u32 %v61, 16
    %v64 = vshrl.u32 %v62, 16
    %v65 = vxor.u32 %v61, %v63
    %v66 = vxor.u32 %v62, %v64
    %v67 = vmul.u32 %v65, 2146121005
    %v68 = vmul.u32 %v66, 2146121005
    %v69 = vshrl.u32 %v67, 15
    %v70 = vshrl.u32 %v68, 15
    %v71 = vxor.u32 %v67, %v69
    %v72 = vxor.u32 %v68, %v70
    %v73 = vmul.u32 %v71, 2221713035
    %v74 = vmul.u32 %v72, 2221713035
    %v75 = vshrl.u32 %v73, 16
    %v76 = vshrl.u32 %v74, 16
    %v77 = vxor.u32 %v73, %v75
    %v78 = vxor.u32 %v74, %v76
    %v79 = vshrl.u32 %v77, 9
    %v80 = vshrl.u32 %v78, 9
    %v81 = vor.u32 %v79, 1065353216
    %v82 = vor.u32 %v80, 1065353216
    %v85 = vsub.f32 %v81, 1.5
    %v86 = vsub.f32 %v82, 1.5
    %v87 = vmul.f32 %v85, 3.1415927
    %v88 = vmul.f32 %v86, 3.1415927
    %v89 = vand.u32 2147483647, %v87
    %vm90 = vcmp.le.f32.partialorder %v89, 0.7853982
    %vm91 = vcmp.lt.s32.totalorder %v87, 0
    %v92 = vand.u32 %v87, 2139095040
    %v93 = vshrl.u32 %v92, 23
    %v94 = vsub.s32 %v93, 127
    %v95 = vand.u32 2147483647, %v87
    %v96 = vand.u32 %v95, 8388607
    %v97 = vor.u32 %v96, 8388608
    %v98 = vsub.s32 0, %v97
    %v99 = vadd.s32 %v94, 1
    %vm100 = vcmp.gt.s32.totalorder %v99, 0
    %v101 = vsel %vm100, %v99, 0
    %v102 = vshrl.u32 %v101, 5
    %v103 = vand.u32 %v101, 31
    %v104 = vsub.s32 32, %v103
    %v105 = vshrl.u32 683565275, %v104
    %v106 = vshll.u32 683565275, %v103
    %v107 = vshrl.u32 2475754826, %v104
    %v108 = vor.u32 %v106, %v107
    %v109 = vshll.u32 2475754826, %v103
    %v110 = vshrl.u32 2131351028, %v104
    %v111 = vor.u32 %v109, %v110
    %v112 = vshll.u32 2131351028, %v103
    %v113 = vshrl.u32 2102212464, %v104
    %v114 = vor.u32 %v112, %v113
    %v115 = vshll.u32 2102212464, %v103
    %v116 = vshrl.u32 920167782, %v104
    %v117 = vor.u32 %v115, %v116
    %v118 = vshll.u32 920167782, %v103
    %v119 = vshrl.u32 1326507024, %v104
    %v120 = vor.u32 %v118, %v119
    %vm121 = vcmp.lt.s32.totalorder %v102, 1
    %vm122 = vcmp.lt.s32.totalorder %v102, 2
    %vm123 = vcmp.lt.s32.totalorder %v102, 3
    %vm124 = vcmp.lt.s32.totalorder %v102, 4
    %v125 = vsel %vm121, %v105, %v108
    %v126 = vsel %vm124, %v114, 2102212464
    %v127 = vsel %vm123, %v111, %v126
    %v128 = vsel %vm122, %v125, %v127
    %v129 = vsel %vm121, %v108, %v111
    %v130 = vsel %vm124, %v117, 920167782
    %v131 = vsel %vm123, %v114, %v130
    %v132 = vsel %vm122, %v129, %v131
    %v133 = vsel %vm121, %v111, %v114
    %v134 = vsel %vm124, %v120, 1326507024
    %v135 = vsel %vm123, %v117, %v134
    %v136 = vsel %vm122, %v133, %v135
    %v137 = vshll.u32 %v97, 8
    %v138 = vmul.u32.u64.compose %v137, %v136
    %v139 = vextract.low.u32 %v138
    %v140 = vextract.high.u32 %v138
    %v141 = vmul.u32.u64.compose %v137, %v132
    %v142 = vextract.low.u32 %v141
    %v143 = vextract.high.u32 %v141
    %v144 = vmul.u32 %v137, %v128
    %v145 = vadd.s32 %v140, %v142
    %vm146 = vc.u32 %v140, %v142
    %v147 = vadd.s32 %v143, 1
    %v148 = vsel %vm146, %v147, %v143
    %v149 = vadd.s32 %v144, %v148
    %v150 = vadd.s32 %v149, 536870912
    %v151 = vshrl.u32 %v150, 30
    %v152 = vshll.u32 %v151, 30
    %v153 = vsub.s32 %v149, %v152
    %vm154 = vcmp.lt.s32.totalorder %v153, 0
    %v155 = vsub.s32 0, %v153
    %v156 = vsel %vm154, %v155, %v153
    %v157 = vclz %v156
    %v158 = vsub.s32 %v157, 2
    %vm159 = vcmp.gt.s32.totalorder 0, %v158
    %v160 = vsel %vm159, 0, %v158
    %v161 = vsub.s32 32, %v160
    %v162 = vshll.u32 %v153, %v160
    %v163 = vshrl.u32 %v145, %v161
    %v164 = vor.u32 %v162, %v163
    %v165 = vsub.s32 4294967266, %v160
    %v166 = vadd.s32 %v165, 127
    %v167 = vshll.u32 %v166, 23
    %v168 = vor.u32 4788187, %v167
    %v169 = vand.u32 2147483647, %v168
    %v171 = vcvt.s32.f32 %v164
    %v172 = vmul.f32 %v171, %v169
    %v173 = vxor.u32 %v172, 2147483648
    %v174 = vsel %vm91, %v173, %v172
    %v175 = vsub.s32 4, %v151
    %v176 = vsel %vm91, %v175, %v151
    %v177 = vsel %vm90, %v87, %v174
    %v178 = vsel %vm90, 0, %v176
    %v179 = vcosq.f32.pop %v177
    %v180 = vsinq.f32.pop %v177
    %vm181 = vweird.f32 %v87
    %v182 = vadd.s32 %v178, 3
    %v183 = vand.u32 %v182, 3
    %vm184 = vcmp.lt.s32.totalorder %v183, 2
    %vm185 = vcmp.eq.s32.totalorder %v183, 0
    %v186 = vxor.u32 %v180, 2147483648
    %v187 = vsel %vm185, %v179, %v186
    %vm188 = vcmp.eq.s32.totalorder %v183, 2
    %v189 = vxor.u32 %v179, 2147483648
    %v190 = vsel %vm188, %v189, %v180
    %v191 = vsel %vm184, %v187, %v190
    %v192 = vsel %vm181, nan, %v191
    %v193 = vand.u32 2147483647, %v88
    %vm194 = vcmp.le.f32.partialorder %v193, 0.7853982
    %vm195 = vcmp.lt.s32.totalorder %v88, 0
    %v196 = vand.u32 %v88, 2139095040
    %v197 = vshrl.u32 %v196, 23
    %v198 = vsub.s32 %v197, 127
    %v199 = vand.u32 2147483647, %v88
    %v200 = vand.u32 %v199, 8388607
    %v201 = vor.u32 %v200, 8388608
    %v202 = vsub.s32 0, %v201
    %v203 = vadd.s32 %v198, 1
    %vm204 = vcmp.gt.s32.totalorder %v203, 0
    %v205 = vsel %vm204, %v203, 0
    %v206 = vshrl.u32 %v205, 5
    %v207 = vand.u32 %v205, 31
    %v208 = vsub.s32 32, %v207
    %v209 = vshrl.u32 683565275, %v208
    %v210 = vshll.u32 683565275, %v207
    %v211 = vshrl.u32 2475754826, %v208
    %v212 = vor.u32 %v210, %v211
    %v213 = vshll.u32 2475754826, %v207
    %v214 = vshrl.u32 2131351028, %v208
    %v215 = vor.u32 %v213, %v214
    %v216 = vshll.u32 2131351028, %v207
    %v217 = vshrl.u32 2102212464, %v208
    %v218 = vor.u32 %v216, %v217
    %v219 = vshll.u32 2102212464, %v207
    %v220 = vshrl.u32 920167782, %v208
    %v221 = vor.u32 %v219, %v220
    %v222 = vshll.u32 920167782, %v207
    %v223 = vshrl.u32 1326507024, %v208
    %v224 = vor.u32 %v222, %v223
    %vm225 = vcmp.lt.s32.totalorder %v206, 1
    %vm226 = vcmp.lt.s32.totalorder %v206, 2
    %vm227 = vcmp.lt.s32.totalorder %v206, 3
    %vm228 = vcmp.lt.s32.totalorder %v206, 4
    %v229 = vsel %vm225, %v209, %v212
    %v230 = vsel %vm228, %v218, 2102212464
    %v231 = vsel %vm227, %v215, %v230
    %v232 = vsel %vm226, %v229, %v231
    %v233 = vsel %vm225, %v212, %v215
    %v234 = vsel %vm228, %v221, 920167782
    %v235 = vsel %vm227, %v218, %v234
    %v236 = vsel %vm226, %v233, %v235
    %v237 = vsel %vm225, %v215, %v218
    %v238 = vsel %vm228, %v224, 1326507024
    %v239 = vsel %vm227, %v221, %v238
    %v240 = vsel %vm226, %v237, %v239
    %v241 = vshll.u32 %v201, 8
    %v242 = vmul.u32.u64.compose %v241, %v240
    %v243 = vextract.low.u32 %v242
    %v244 = vextract.high.u32 %v242
    %v245 = vmul.u32.u64.compose %v241, %v236
    %v246 = vextract.low.u32 %v245
    %v247 = vextract.high.u32 %v245
    %v248 = vmul.u32 %v241, %v232
    %v249 = vadd.s32 %v244, %v246
    %vm250 = vc.u32 %v244, %v246
    %v251 = vadd.s32 %v247, 1
    %v252 = vsel %vm250, %v251, %v247
    %v253 = vadd.s32 %v248, %v252
    %v254 = vadd.s32 %v253, 536870912
    %v255 = vshrl.u32 %v254, 30
    %v256 = vshll.u32 %v255, 30
    %v257 = vsub.s32 %v253, %v256
    %vm258 = vcmp.lt.s32.totalorder %v257, 0
    %v259 = vsub.s32 0, %v257
    %v260 = vsel %vm258, %v259, %v257
    %v261 = vclz %v260
    %v262 = vsub.s32 %v261, 2
    %vm263 = vcmp.gt.s32.totalorder 0, %v262
    %v264 = vsel %vm263, 0, %v262
    %v265 = vsub.s32 32, %v264
    %v266 = vshll.u32 %v257, %v264
    %v267 = vshrl.u32 %v249, %v265
    %v268 = vor.u32 %v266, %v267
    %v269 = vsub.s32 4294967266, %v264
    %v270 = vadd.s32 %v269, 127
    %v271 = vshll.u32 %v270, 23
    %v272 = vor.u32 4788187, %v271
    %v273 = vand.u32 2147483647, %v272
    %v275 = vcvt.s32.f32 %v268
    %v276 = vmul.f32 %v275, %v273
    %v277 = vxor.u32 %v276, 2147483648
    %v278 = vsel %vm195, %v277, %v276
    %v279 = vsub.s32 4, %v255
    %v280 = vsel %vm195, %v279, %v255
    %v281 = vsel %vm194, %v88, %v278
    %v282 = vsel %vm194, 0, %v280
    %v283 = vcosq.f32.pop %v281
    %v284 = vsinq.f32.pop %v281
    %vm285 = vweird.f32 %v88
    %v286 = vadd.s32 %v282, 3
    %v287 = vand.u32 %v286, 3
    %vm288 = vcmp.lt.s32.totalorder %v287, 2
    %vm289 = vcmp.eq.s32.totalorder %v287, 0
    %v290 = vxor.u32 %v284, 2147483648
    %v291 = vsel %vm289, %v283, %v290
    %vm292 = vcmp.eq.s32.totalorder %v287, 2
    %v293 = vxor.u32 %v283, 2147483648
    %v294 = vsel %vm292, %v293, %v284
    %v295 = vsel %vm288, %v291, %v294
    %v296 = vsel %vm285, nan, %v295
    %v297 = vmul.f32 %v192, %v192
    %v298 = vmul.f32 %v296, %v296
    %v299 = vsub.f32 1.0, %v297
    %v300 = vsub.f32 1.0, %v298
    %v301 = vmax.f32 %v299, 1e-12
    %v302 = vmax.f32 %v300, 1e-12
    %v303 = vmul.f32 %v48, %v192
    %v304 = vmul.f32 %v48, %v296
    %v305 = vrsqrt.pop %v301
    %v306 = vrsqrt.pop %v302
    %v307 = vmul.f32 %v303, %v305
    %v308 = vmul.f32 %v304, %v306
    %v309 = vadd.f32 %v27, %v307
    %v310 = vadd.f32 %v28, %v308
    %311 = vst [vmem:[#allocation6] sm:$0xff] %v309
    %312 = vst [vmem:[#allocation6 + $0x8] sm:$0xff] %v310
    // Predicated region
    $region14: #{tpu_custom_call.1} parent=1 // pred_check
      _
    $region15: #{tpu_custom_call.1} parent=1 // pred_check_branch
      %314 = sbr.rel (0) target = $region17
    $region16: #{tpu_custom_call.1} parent=1 // pred_region
      %s316 = ssub.s32 256, 256
      %317 = vsyncadd [#allocation5], %s316
      %s318 = sshll.u32 [#allocation6], 4
      %s319 = int_to_ptr.vmem [resolvable:$true] %s318
      %324 = dma.vmem_to_hbm [thread:$0]  %s319, 256, %s2, [#allocation5], 128, 128, 8
    $region17: #{tpu_custom_call.1} parent=1 // pred_fallthru
      _
    // Predicated region
    $region18: #{tpu_custom_call.1} parent=1 // pred_check
      _
    $region19: #{tpu_custom_call.1} parent=1 // pred_check_branch
      %326 = sbr.rel (0) target = $region21
    $region20: #{tpu_custom_call.1} parent=1 // pred_region
      %327 = dma.done [#allocation5], 256
    $region21: #{tpu_custom_call.1} parent=1 // pred_fallthru
      _
    %328 = vsyncpa [#allocation4], 1
    %329 = vsyncpa [#allocation5], 1

</llo_original>
